<compile_context>
chip_gen: v5e
topology: v5e:2x2
jax: 0.10.0
libtpu: 0.0.40
codegen_flags: <defaults>
</compile_context>

<pallas_src>
import functools

import jax
import jax.numpy as jnp
from jax.experimental import pallas as pl
from jax.experimental.pallas import tpu as pltpu

_LANES = 128


def _round_up(x, m):
    return (x + m - 1) // m * m


def _pick_tile(n, base, max_tile):
    """Multiple of `base` (<= max_tile) minimizing overhang of n; ties -> larger."""
    hi = max(base, min(max_tile, _round_up(n, base)))
    best, best_pad = base, _round_up(n, base)
    for cand in range(base, hi + 1, base):
        padded = _round_up(n, cand)
        if padded <= best_pad:  # ties -> larger tile (fewer grid steps)
            best, best_pad = cand, padded
    return best


def _semckd_kernel(s_ref, t_ref, o_ref, *, n_rows, n_cols, need_r_mask, need_d_mask):
    r = pl.program_id(0)
    d = pl.program_id(1)

    @pl.when(d == 0)
    def _init():
        o_ref[...] = jnp.zeros_like(o_ref)

    diff = s_ref[...].astype(jnp.float32) - t_ref[...].astype(jnp.float32)
    r_tile, d_tile = diff.shape

    # Edge-block masking (only emitted when the array is not tile-aligned):
    # out-of-range lanes/rows of an overhanging block hold unspecified data
    # and must be zeroed before squaring.
    if need_d_mask:
        col = jax.lax.broadcasted_iota(jnp.int32, (r_tile, d_tile), 1)
        diff = jnp.where(col < n_cols - d * d_tile, diff, 0.0)
    if need_r_mask:
        row = jax.lax.broadcasted_iota(jnp.int32, (r_tile, d_tile), 0)
        diff = jnp.where(row < n_rows - r * r_tile, diff, 0.0)

    sq = diff * diff
    # Lane-dense accumulation: fold lanes into (d_tile//128, 128) and sum the
    # middle axis only (pure VALU adds).  Cross-lane reduce happens once in
    # the wrapper, not per grid step.
    o_ref[...] += jnp.sum(sq.reshape(r_tile, d_tile // _LANES, _LANES), axis=1)


def semckd_loss(s_value, f_target, weight):
    """Pallas implementation of SemCKDLoss.forward.

    Args:
      s_value:  (num_stu, num_tea, bsz, D) — stacked s_value[i][j], flattened.
      f_target: (num_stu, num_tea, bsz, D) — stacked f_target[i][j], flattened.
      weight:   (bsz, num_stu, num_tea).

    Returns:
      scalar loss = sum(weight * ind_loss) / (bsz * num_stu).
    """
    num_stu, num_tea, bsz, D = s_value.shape
    R = num_stu * num_tea * bsz

    s2 = s_value.reshape(R, D)
    t2 = f_target.reshape(R, D)

    itemsize = jnp.dtype(s_value.dtype).itemsize
    sub = max(1, 4 // itemsize)      # sublane packing factor (1 f32, 2 bf16, 4 int8)
    r_base = 8 * sub                 # native sublane tile for this dtype
    d_max = 4096 * sub               # ~constant bytes per grid step across dtypes
    r_max = 256

    # Guarantee >= 2 tiles on the 'parallel' row axis whenever possible so
    # both v7x TensorCores get work (harmless on single-TC v5e/v6e).
    # TODO(synk): for R <= one sublane tile, an extra parallel split of D
    # (per-split partial sums summed in the wrapper) would still use both TCs.
    r_pad_min = _round_up(R, r_base)
    if r_pad_min >= 2 * r_base:
        r_max = max(r_base, min(r_max, (r_pad_min // 2) // r_base * r_base))
    r_tile = _pick_tile(R, r_base, r_max)
    d_tile = _pick_tile(D, _LANES, d_max)

    n_r = -(-R // r_tile)
    n_d = -(-D // d_tile)

    kernel = functools.partial(
        _semckd_kernel,
        n_rows=R,
        n_cols=D,
        need_r_mask=(R % r_tile != 0),
        need_d_mask=(D % d_tile != 0),
    )

    cost = pl.CostEstimate(
        flops=3 * R * D,
        transcendentals=0,
        bytes_accessed=2 * R * D * itemsize + n_r * r_tile * _LANES * 4,
    )

    partial_sums = pl.pallas_call(
        kernel,
        out_shape=jax.ShapeDtypeStruct((n_r * r_tile, _LANES), jnp.float32),
        grid=(n_r, n_d),
        in_specs=[
            pl.BlockSpec((r_tile, d_tile), lambda r, d: (r, d)),
            pl.BlockSpec((r_tile, d_tile), lambda r, d: (r, d)),
        ],
        out_specs=pl.BlockSpec((r_tile, _LANES), lambda r, d: (r, 0)),
        compiler_params=pltpu.CompilerParams(
            dimension_semantics=("parallel", "arbitrary"),
            vmem_limit_bytes=48 * 1024 * 1024,
        ),
        cost_estimate=cost,
    )(s2, t2)

    # Tiny O(R) epilogue in the wrapper: final 128-lane reduce, attention
    # weights, 1/D and 1/(bsz*num_stu).  Row r = (i*num_tea + j)*bsz + b
    # matches w_rows ordering below.
    row_sums = jnp.sum(partial_sums[:R], axis=-1)
    w_rows = jnp.transpose(weight, (1, 2, 0)).reshape(R).astype(jnp.float32)
    return jnp.sum(w_rows * row_sums) / jnp.float32(bsz * num_stu * D)


def semckd_loss_ref(s_value, f_target, weight):
    """Pure-JAX reference mirroring the PyTorch forward."""
    diff = s_value.astype(jnp.float32) - f_target.astype(jnp.float32)
    ind = jnp.mean(diff * diff, axis=-1)            # (num_stu, num_tea, bsz)
    ind = jnp.transpose(ind, (2, 0, 1))             # (bsz, num_stu, num_tea)
    bsz, num_stu, _ = weight.shape
    return jnp.sum(weight * ind) / (1.0 * bsz * num_stu)


if __name__ == "__main__":
    key = jax.random.PRNGKey(0)
    bsz, num_stu, num_tea = 2, 3, 3
    C, H, W = 4, 16, 16
    D = C * H * W

    k1, k2, k3 = jax.random.split(key, 3)
    # s_value[i][j] / f_target[i][j] : (bsz, C, H, W), stacked over (i, j).
    s_feats = jax.random.normal(k1, (num_stu, num_tea, bsz, C, H, W), jnp.float32)
    t_feats = jax.random.normal(k2, (num_stu, num_tea, bsz, C, H, W), jnp.float32)
    # Deterministic synthetic attention weights (softmax over teachers).
    logits = jax.random.normal(k3, (bsz, num_stu, num_tea), jnp.float32)
    weight = jax.nn.softmax(logits, axis=-1)

    s_value = s_feats.reshape(num_stu, num_tea, bsz, D)
    f_target = t_feats.reshape(num_stu, num_tea, bsz, D)

    loss = jax.block_until_ready(semckd_loss(s_value, f_target, weight))
    ref = jax.block_until_ready(semckd_loss_ref(s_value, f_target, weight))

    assert jnp.allclose(loss, ref, rtol=1e-5, atol=1e-5), (loss, ref)
    print("KERNEL_OK")
</pallas_src>

<mosaic_0001>
module attributes {stable_mosaic.version = 11 : i64} {
  func.func @_semckd_kernel(%arg0: i32, %arg1: i32, %arg2: memref<8x1024xf32, #tpu.memory_space<vmem>>, %arg3: memref<8x1024xf32, #tpu.memory_space<vmem>>, %arg4: memref<8x128xf32, #tpu.memory_space<vmem>>) attributes {dimension_semantics = [#tpu.dimension_semantics<parallel>, #tpu.dimension_semantics<arbitrary>], iteration_bounds = array<i64: 3, 1>, scalar_prefetch = 0 : i64, scratch_operands = 0 : i64, tpu.core_type = #tpu.core_type<tc>, window_params = [{transform_indices = @transform_0, window_bounds = array<i64: 8, 1024>}, {transform_indices = @transform_1, window_bounds = array<i64: 8, 1024>}, {transform_indices = @transform_2, window_bounds = array<i64: 8, 128>}]} {
    %c0_i32 = arith.constant 0 : i32
    %0 = arith.cmpi eq, %arg1, %c0_i32 : i32
    %1 = arith.extui %0 : i1 to i32
    %c0_i32_0 = arith.constant 0 : i32
    %2 = arith.cmpi ne, %1, %c0_i32_0 : i32
    scf.if %2 {
      %cst_9 = arith.constant 0.000000e+00 : f32
      %19 = vector.broadcast %cst_9 : f32 to vector<8x128xf32>
      %c0_10 = arith.constant 0 : index
      %c0_11 = arith.constant 0 : index
      %20 = vector.load %arg4[%c0_10, %c0_11] : memref<8x128xf32, #tpu.memory_space<vmem>>, vector<8x128xf32>
      tpu.vector_store %arg4[%c0_10, %c0_11], %19 {strides = array<i32>} : memref<8x128xf32, #tpu.memory_space<vmem>>, vector<8x128xf32>,
    } else {
    }
    %c0 = arith.constant 0 : index
    %c0_1 = arith.constant 0 : index
    %3 = vector.load %arg2[%c0, %c0_1] : memref<8x1024xf32, #tpu.memory_space<vmem>>, vector<8x1024xf32>
    %c0_2 = arith.constant 0 : index
    %c0_3 = arith.constant 0 : index
    %4 = vector.load %arg3[%c0_2, %c0_3] : memref<8x1024xf32, #tpu.memory_space<vmem>>, vector<8x1024xf32>
    %5 = arith.subf %3, %4 : vector<8x1024xf32>
    %6 = tpu.iota {dimensions = array<i32: 0>} : vector<8x1024xi32>
    %c8_i32 = arith.constant 8 : i32
    %7 = arith.muli %arg0, %c8_i32 : i32
    %c18_i32 = arith.constant 18 : i32
    %8 = arith.subi %c18_i32, %7 : i32
    %9 = vector.broadcast %8 : i32 to vector<8x1024xi32>
    %10 = arith.cmpi slt, %6, %9 : vector<8x1024xi32>
    %cst = arith.constant 0.000000e+00 : f32
    %11 = vector.broadcast %cst : f32 to vector<8x1024xf32>
    %12 = arith.select %10, %5, %11 : vector<8x1024xi1>, vector<8x1024xf32>
    %13 = arith.mulf %12, %12 : vector<8x1024xf32>
    %c0_4 = arith.constant 0 : index
    %c0_5 = arith.constant 0 : index
    %14 = vector.load %arg4[%c0_4, %c0_5] : memref<8x128xf32, #tpu.memory_space<vmem>>, vector<8x128xf32>
    %15 = vector.shape_cast %13 : vector<8x1024xf32> to vector<8x8x128xf32>
    %cst_6 = arith.constant dense<0.000000e+00> : vector<8x128xf32>
    %16 = vector.multi_reduction <add>, %15, %cst_6 [1] : vector<8x8x128xf32> to vector<8x128xf32>
    %17 = arith.addf %14, %16 : vector<8x128xf32>
    %c0_7 = arith.constant 0 : index
    %c0_8 = arith.constant 0 : index
    %18 = vector.load %arg4[%c0_7, %c0_8] : memref<8x128xf32, #tpu.memory_space<vmem>>, vector<8x128xf32>
    tpu.vector_store %arg4[%c0_7, %c0_8], %17 {strides = array<i32>} : memref<8x128xf32, #tpu.memory_space<vmem>>, vector<8x128xf32>,
    return
  }
  func.func @transform_0(%arg0: i32, %arg1: i32) -> (i32, i32) {
    %c0_i32 = arith.constant 0 : i32
    return %arg0, %arg1 : i32, i32
  }
  func.func @transform_1(%arg0: i32, %arg1: i32) -> (i32, i32) {
    %c0_i32 = arith.constant 0 : i32
    return %arg0, %arg1 : i32, i32
  }
  func.func @transform_2(%arg0: i32, %arg1: i32) -> (i32, i32) {
    %c0_i32 = arith.constant 0 : i32
    %c0_i32_0 = arith.constant 0 : i32
    return %arg0, %c0_i32 : i32, i32
  }
}

</mosaic_0001>

<llo_original>
// kernel: tpu_custom_call.1
$region0: #{tpu_custom_call.1}
  #allocation0 [shape = 'u32[]', space=smem, size = 0x4, offset = 0x4, fixed_abs, tag = 'smem constant byte address 0x4 - core index']
  #allocation1 [shape = 'u32[72,128]{1,0:T(1,128)}', space=vmem, size = 0x9000, scoped, tag = 'internal scratch']
  %s0 = inlined_call_operand.hbm [shape: f32[18,1024], index: 0, kind: input, shape index: {}]
  %s1 = inlined_call_operand.hbm [shape: f32[18,1024], index: 1, kind: input, shape index: {}]
  %s2 = inlined_call_operand.hbm [shape: f32[24,128], index: 2, kind: output, shape index: {}]
  %s3 = sld [smem:[#allocation0]]
  $region53: #{tpu_custom_call.1} parent=0
    _
  %s5 = ssub.s32 1, %s3
  %s6 = scalar_select 0, %s5, %s3
  $region1: #{tpu_custom_call.1} parent=0
    #allocation2 [shape = 'u8[65536]{0}', space=vmem, size = 0x10000, scoped, tag = 'input window, operand 0']
    #allocation3 [shape = 's32[2]{0}', space=sflag, size = 0x8, scoped, tag = 'scoped memory for tpu_custom_call.1']
    #allocation4 [shape = 's32[2]{0}', space=sflag, size = 0x8, scoped, tag = 'scoped memory for tpu_custom_call.1']
    #allocation5 [shape = 'u8[65536]{0}', space=vmem, size = 0x10000, scoped, tag = 'input window, operand 1']
    #allocation6 [shape = 's32[2]{0}', space=sflag, size = 0x8, scoped, tag = 'scoped memory for tpu_custom_call.1']
    #allocation7 [shape = 'u8[8192]{0}', space=vmem, size = 0x2000, scoped, tag = 'output window, operand 0']
    %7 = vsyncpa [#allocation3], 0
    %s8 = scalar_lea.sflag [#allocation3], 1
    %9 = vsyncpa %s8, 0
    %10 = vsyncpa [#allocation6], 0
    %s11 = scalar_lea.sflag [#allocation6], 1
    %12 = vsyncpa %s11, 0
    %13 = vsyncpa [#allocation4], 0
    %s14 = scalar_lea.sflag [#allocation4], 1
    %15 = vsyncpa %s14, 0
    loop: start=0, step=1, limit=5
    $region2: #{tpu_custom_call.1} parent=1 // loop_pre_header
      _
    $region3: #{tpu_custom_call.1} parent=1 // loop_header
      %s17 = sphi 0, %s21
      %p18 = scmp.ge.s32.totalorder %s17, 5
      %s24 = sphi 0, %s36
      %s25 = sphi 0, %s32
      %s26 = sphi 0, %s24
      %s27 = sphi 0, %s25
      %s28 = sphi 0, %s26
      %s29 = sphi 0, %s27
      %s41 = sphi 0, %s43
      %s44 = sphi 0, %s41
      %s45 = sphi 0, %s44
      %s61 = sphi 0, %s45
      %s69 = sphi 0, %s71
      %s72 = sphi 0, %s69
      %s73 = sphi 0, %s72
      %s89 = sphi 0, %s73
      %s95 = sphi 0, %s97
      %s98 = sphi 0, %s95
      %s99 = sphi 0, %s98
      %s115 = sphi 0, %s99
    $region4: #{tpu_custom_call.1} parent=1 // loop_header_branch
      %20 = sbr.rel (%p18) target = $region8
    $region5: #{tpu_custom_call.1} parent=1 // loop_body
      %s22 = ssub.s32 %s17, 1
      %s23 = ssub.s32 %s17, 2
      %s30 = sadd.s32 1, %s25
      %p31 = scmp.ge.s32.totalorder %s30, 1
      %s32 = scalar_select %p31, 0, %s30
      %s33 = sadd.s32 1, %s24
      %s34 = scalar_select %p31, %s33, %s24
      %p35 = scmp.ge.s32.totalorder %s34, 3
      %s36 = scalar_select %p35, 0, %s34
      %s37 = ssub.s32 %s24, %s36
      %s38 = ssub.s32 %s25, %s32
      %s39 = sor.u32 %s37, %s38
      %p40 = scmp.eq.s32.totalorder %s39, 0
      %s42 = sadd.s32 %s41, 1
      %s43 = scalar_select %p40, %s41, %s42
      %p46 = pneg %p40
      %p47 = scmp.eq.s32.totalorder %s17, 2
      %p48 = por %p46, %p47
      %p49 = scmp.ne.s32.totalorder %s41, %s44
      %p50 = scmp.eq.s32.totalorder %s17, 0
      %p51 = por %p49, %p50
      %p52 = scmp.ne.s32.totalorder %s41, %s44
      %p53 = scmp.eq.s32.totalorder %s22, 2
      %p54 = por %p52, %p53
      %p55 = scmp.ne.s32.totalorder %s44, %s45
      %p56 = scmp.eq.s32.totalorder %s22, 0
      %p57 = por %p55, %p56
      %p58 = scmp.ne.s32.totalorder %s44, %s45
      %p59 = scmp.eq.s32.totalorder %s23, 2
      %p60 = por %p58, %p59
      %p62 = scmp.ne.s32.totalorder %s45, %s61
      %p63 = scmp.eq.s32.totalorder %s23, 0
      %p64 = por %p62, %p63
      %s65 = ssub.s32 %s24, %s36
      %s66 = ssub.s32 %s25, %s32
      %s67 = sor.u32 %s65, %s66
      %p68 = scmp.eq.s32.totalorder %s67, 0
      %s70 = sadd.s32 %s69, 1
      %s71 = scalar_select %p68, %s69, %s70
      %p74 = pneg %p68
      %p75 = scmp.eq.s32.totalorder %s17, 2
      %p76 = por %p74, %p75
      %p77 = scmp.ne.s32.totalorder %s69, %s72
      %p78 = scmp.eq.s32.totalorder %s17, 0
      %p79 = por %p77, %p78
      %p80 = scmp.ne.s32.totalorder %s69, %s72
      %p81 = scmp.eq.s32.totalorder %s22, 2
      %p82 = por %p80, %p81
      %p83 = scmp.ne.s32.totalorder %s72, %s73
      %p84 = scmp.eq.s32.totalorder %s22, 0
      %p85 = por %p83, %p84
      %p86 = scmp.ne.s32.totalorder %s72, %s73
      %p87 = scmp.eq.s32.totalorder %s23, 2
      %p88 = por %p86, %p87
      %p90 = scmp.ne.s32.totalorder %s73, %s89
      %p91 = scmp.eq.s32.totalorder %s23, 0
      %p92 = por %p90, %p91
      %s93 = ssub.s32 %s24, %s36
      %p94 = scmp.eq.s32.totalorder %s93, 0
      %s96 = sadd.s32 %s95, 1
      %s97 = scalar_select %p94, %s95, %s96
      %p100 = pneg %p94
      %p101 = scmp.eq.s32.totalorder %s17, 2
      %p102 = por %p100, %p101
      %p103 = scmp.ne.s32.totalorder %s95, %s98
      %p104 = scmp.eq.s32.totalorder %s17, 0
      %p105 = por %p103, %p104
      %p106 = scmp.ne.s32.totalorder %s95, %s98
      %p107 = scmp.eq.s32.totalorder %s22, 2
      %p108 = por %p106, %p107
      %p109 = scmp.ne.s32.totalorder %s98, %s99
      %p110 = scmp.eq.s32.totalorder %s22, 0
      %p111 = por %p109, %p110
      %p112 = scmp.ne.s32.totalorder %s98, %s99
      %p113 = scmp.eq.s32.totalorder %s23, 2
      %p114 = por %p112, %p113
      %p116 = scmp.ne.s32.totalorder %s99, %s115
      %p117 = scmp.eq.s32.totalorder %s23, 0
      %p118 = por %p116, %p117
      %p119 = scmp.le.s32.totalorder 1, %s17
      %p120 = scmp.lt.s32.totalorder %s17, 4
      %p121 = pnand %p119, %p120
      %p122 = pneg %p121
      // Predicated region
      $region9: #{tpu_custom_call.1} parent=5 // pred_check
        _
      $region10: #{tpu_custom_call.1} parent=5 // pred_check_branch
        %124 = sbr.rel (%p121) target = $region12
      $region11: #{tpu_custom_call.1} parent=5 // pred_region
        %s125 = ssub.s32 %s17, 1
      $region12: #{tpu_custom_call.1} parent=5 // pred_fallthru
        _
      %p126 = scmp.lt.s32.totalorder %s17, 3
      // Predicated region
      $region13: #{tpu_custom_call.1} parent=5 // pred_check
        %p127 = pneg %p126
      $region14: #{tpu_custom_call.1} parent=5 // pred_check_branch
        %129 = sbr.rel (%p127) target = $region16
      $region15: #{tpu_custom_call.1} parent=5 // pred_region
        // Predicated region
        $region17: #{tpu_custom_call.1} parent=15 // pred_check
          %p130 = pneg %p51
        $region18: #{tpu_custom_call.1} parent=15 // pred_check_branch
          %132 = sbr.rel (%p130) target = $region20
        $region19: #{tpu_custom_call.1} parent=15 // pred_region
          %s133 = sand.u32 %s41, 1
          %s134 = scalar_lea.sflag [#allocation3], %s133
          %s135 = sand.u32 %s41, 1
          %s136 = smul.addr %s135, 64
          %s137 = scalar_lea.vmem [#allocation2], %s136
          %s138 = smul.u32 8, %s25
          %140 = vsyncadd %s134, 0
          %s141 = smul.addr %s24, 8
          %s142 = sadd.s32 %s138, %s141
          %s143 = smul.addr %s142, 8
          %s144 = scalar_lea.hbm %s0, %s143
          %s146 = sshll.u32 %s144, 4
          %s147 = int_to_ptr.hbm [resolvable:$true] %s146
          %s148 = sshll.u32 %s137, 4
          %s149 = int_to_ptr.vmem [resolvable:$true] %s148
          %151 = dma.hbm_to_vmem [thread:$0]  %s147, 1024, %s149, %s134
        $region20: #{tpu_custom_call.1} parent=15 // pred_fallthru
          _
        // Predicated region
        $region21: #{tpu_custom_call.1} parent=15 // pred_check
          %p152 = pneg %p79
        $region22: #{tpu_custom_call.1} parent=15 // pred_check_branch
          %154 = sbr.rel (%p152) target = $region24
        $region23: #{tpu_custom_call.1} parent=15 // pred_region
          %s155 = sand.u32 %s69, 1
          %s156 = scalar_lea.sflag [#allocation6], %s155
          %s157 = sand.u32 %s69, 1
          %s158 = smul.addr %s157, 64
          %s159 = scalar_lea.vmem [#allocation5], %s158
          %s160 = smul.u32 8, %s25
          %162 = vsyncadd %s156, 0
          %s163 = smul.addr %s24, 8
          %s164 = sadd.s32 %s160, %s163
          %s165 = smul.addr %s164, 8
          %s166 = scalar_lea.hbm %s1, %s165
          %s168 = sshll.u32 %s166, 4
          %s169 = int_to_ptr.hbm [resolvable:$true] %s168
          %s170 = sshll.u32 %s159, 4
          %s171 = int_to_ptr.vmem [resolvable:$true] %s170
          %173 = dma.hbm_to_vmem [thread:$0]  %s169, 1024, %s171, %s156
        $region24: #{tpu_custom_call.1} parent=15 // pred_fallthru
          _
      $region16: #{tpu_custom_call.1} parent=5 // pred_fallthru
        _
      %p174 = scmp.le.s32.totalorder 1, %s17
      %p175 = scmp.lt.s32.totalorder %s17, 4
      %p176 = pnand %p174, %p175
      %p177 = pneg %p176
      // Predicated region
      $region25: #{tpu_custom_call.1} parent=5 // pred_check
        _
      $region26: #{tpu_custom_call.1} parent=5 // pred_check_branch
        %179 = sbr.rel (%p176) target = $region28
      $region27: #{tpu_custom_call.1} parent=5 // pred_region
        %s180 = ssub.s32 %s17, 1
        %s181 = sand.u32 %s44, 1
        %s182 = scalar_lea.sflag [#allocation3], %s181
        %s183 = sand.u32 %s44, 1
        %s184 = smul.addr %s183, 64
        %s185 = scalar_lea.vmem [#allocation2], %s184
        // Predicated region
        $region29: #{tpu_custom_call.1} parent=27 // pred_check
          %p186 = pneg %p57
        $region30: #{tpu_custom_call.1} parent=27 // pred_check_branch
          %188 = sbr.rel (%p186) target = $region32
        $region31: #{tpu_custom_call.1} parent=27 // pred_region
          %190 = dma.done %s182, 1024
        $region32: #{tpu_custom_call.1} parent=27 // pred_fallthru
          _
        %s191 = sand.u32 %s72, 1
        %s192 = scalar_lea.sflag [#allocation6], %s191
        %s193 = sand.u32 %s72, 1
        %s194 = smul.addr %s193, 64
        %s195 = scalar_lea.vmem [#allocation5], %s194
        // Predicated region
        $region33: #{tpu_custom_call.1} parent=27 // pred_check
          %p196 = pneg %p85
        $region34: #{tpu_custom_call.1} parent=27 // pred_check_branch
          %198 = sbr.rel (%p196) target = $region36
        $region35: #{tpu_custom_call.1} parent=27 // pred_region
          %200 = dma.done %s192, 1024
        $region36: #{tpu_custom_call.1} parent=27 // pred_fallthru
          _
        %s201 = sand.u32 %s44, 1
        %s202 = scalar_lea.sflag [#allocation3], %s201
        %s203 = sand.u32 %s44, 1
        %s204 = smul.addr %s203, 64
        %s205 = scalar_lea.vmem [#allocation2], %s204
        %p206 = pneg %p57
        %p207 = pneg %p54
        %s208 = sand.u32 %s72, 1
        %s209 = scalar_lea.sflag [#allocation6], %s208
        %s210 = sand.u32 %s72, 1
        %s211 = smul.addr %s210, 64
        %s212 = scalar_lea.vmem [#allocation5], %s211
        %p213 = pneg %p85
        %p214 = pneg %p82
        %p215 = pneg %p111
        %p216 = pneg %p108
        %s217 = sand.u32 %s98, 1
        %s218 = scalar_lea.sflag [#allocation4], %s217
        %s219 = sand.u32 %s98, 1
        %s220 = smul.addr %s219, 8
        %s221 = scalar_lea.vmem [#allocation7], %s220
        %s222 = smul.u32 8, %s27
        %s223 = smul.u32 8, %s27
        %p224 = scmp.eq.s32.totalorder %s27, 0
        // Predicated region
        $region37: #{tpu_custom_call.1} parent=27 // pred_check
          %p225 = pneg %p224
        $region38: #{tpu_custom_call.1} parent=27 // pred_check_branch
          %227 = sbr.rel (%p225) target = $region40
        $region39: #{tpu_custom_call.1} parent=27 // pred_region
          %228 = vst [vmem:[%s221] sm:$0xff] 0.0
        $region40: #{tpu_custom_call.1} parent=27 // pred_fallthru
          _
        %v229 = vld [vmem:[%s185] sm:$0xff]
        %v230 = vld [vmem:[%s185 + $0x8] sm:$0xff]
        %v231 = vld [vmem:[%s185 + $0x10] sm:$0xff]
        %v232 = vld [vmem:[%s185 + $0x18] sm:$0xff]
        %v233 = vld [vmem:[%s185 + $0x20] sm:$0xff]
        %v234 = vld [vmem:[%s185 + $0x28] sm:$0xff]
        %v235 = vld [vmem:[%s185 + $0x30] sm:$0xff]
        %v236 = vld [vmem:[%s185 + $0x38] sm:$0xff]
        %v237 = vld [vmem:[%s195] sm:$0xff]
        %v238 = vld [vmem:[%s195 + $0x8] sm:$0xff]
        %v239 = vld [vmem:[%s195 + $0x10] sm:$0xff]
        %v240 = vld [vmem:[%s195 + $0x18] sm:$0xff]
        %v241 = vld [vmem:[%s195 + $0x20] sm:$0xff]
        %v242 = vld [vmem:[%s195 + $0x28] sm:$0xff]
        %v243 = vld [vmem:[%s195 + $0x30] sm:$0xff]
        %v244 = vld [vmem:[%s195 + $0x38] sm:$0xff]
        %v245 = vsub.f32 %v229, %v237
        %v246 = vsub.f32 %v230, %v238
        %v247 = vsub.f32 %v231, %v239
        %v248 = vsub.f32 %v232, %v240
        %v249 = vsub.f32 %v233, %v241
        %v250 = vsub.f32 %v234, %v242
        %v251 = vsub.f32 %v235, %v243
        %v252 = vsub.f32 %v236, %v244
        %v253 = vlaneseq
        %v254 = vshrl.u32 %v253, 7
        %s255 = smul.u32 %s26, 8
        %s256 = ssub.s32 18, %s255
        %v257 = vstv %s256
        %vm258 = vcmp.lt.s32.totalorder %v254, %v257
        %v259 = vsel %vm258, %v245, 0.0
        %v260 = vsel %vm258, %v246, 0.0
        %v261 = vsel %vm258, %v247, 0.0
        %v262 = vsel %vm258, %v248, 0.0
        %v263 = vsel %vm258, %v249, 0.0
        %v264 = vsel %vm258, %v250, 0.0
        %v265 = vsel %vm258, %v251, 0.0
        %v266 = vsel %vm258, %v252, 0.0
        %v267 = vmul.f32 %v259, %v259
        %v268 = vmul.f32 %v260, %v260
        %v269 = vmul.f32 %v261, %v261
        %v270 = vmul.f32 %v262, %v262
        %v271 = vmul.f32 %v263, %v263
        %v272 = vmul.f32 %v264, %v264
        %v273 = vmul.f32 %v265, %v265
        %v274 = vmul.f32 %v266, %v266
        %v275 = vld [vmem:[%s221] sm:$0xff]
        %v276 = vrot.slane %v269, 4
        %vm277 = vcmask 1047556
        %v278 = vsel %vm277, %v276, %v267
        %v279 = vrot.slane %v267, 4
        %v280 = vsel %vm277, %v269, %v279
        %v282 = vunpack.c.l.s4 1983009808
        %v283 = vunpack.c.0.s8 %v282
        %v284 = vperm.slane %v278, %v283
        %v286 = vunpack.c.l.s4 1983009808
        %v287 = vunpack.c.0.s8 %v286
        %v288 = vperm.slane %v280, %v287
        %v289 = vrot.slane %v270, 4
        %v290 = vsel %vm277, %v289, %v268
        %v291 = vrot.slane %v268, 4
        %v292 = vsel %vm277, %v270, %v291
        %v294 = vunpack.c.l.s4 1983009808
        %v295 = vunpack.c.0.s8 %v294
        %v296 = vperm.slane %v290, %v295
        %v298 = vunpack.c.l.s4 1983009808
        %v299 = vunpack.c.0.s8 %v298
        %v300 = vperm.slane %v292, %v299
        %v301 = vrot.slane %v273, 4
        %v302 = vsel %vm277, %v301, %v271
        %v303 = vrot.slane %v271, 4
        %v304 = vsel %vm277, %v273, %v303
        %v306 = vunpack.c.l.s4 1983009808
        %v307 = vunpack.c.0.s8 %v306
        %v308 = vperm.slane %v302, %v307
        %v310 = vunpack.c.l.s4 1983009808
        %v311 = vunpack.c.0.s8 %v310
        %v312 = vperm.slane %v304, %v311
        %v313 = vrot.slane %v274, 4
        %v314 = vsel %vm277, %v313, %v272
        %v315 = vrot.slane %v272, 4
        %v316 = vsel %vm277, %v274, %v315
        %v318 = vunpack.c.l.s4 1983009808
        %v319 = vunpack.c.0.s8 %v318
        %v320 = vperm.slane %v314, %v319
        %v322 = vunpack.c.l.s4 1983009808
        %v323 = vunpack.c.0.s8 %v322
        %v324 = vperm.slane %v316, %v323
        %v325 = vrot.slane %v296, 4
        %v326 = vsel %vm277, %v325, %v284
        %v327 = vrot.slane %v284, 4
        %v328 = vsel %vm277, %v296, %v327
        %v330 = vunpack.c.l.s4 1934713408
        %v331 = vunpack.c.0.s8 %v330
        %v332 = vperm.slane %v326, %v331
        %v334 = vunpack.c.l.s4 1934713408
        %v335 = vunpack.c.0.s8 %v334
        %v336 = vperm.slane %v328, %v335
        %v337 = vrot.slane %v300, 4
        %v338 = vsel %vm277, %v337, %v288
        %v339 = vrot.slane %v288, 4
        %v340 = vsel %vm277, %v300, %v339
        %v342 = vunpack.c.l.s4 1934713408
        %v343 = vunpack.c.0.s8 %v342
        %v344 = vperm.slane %v338, %v343
        %v346 = vunpack.c.l.s4 1934713408
        %v347 = vunpack.c.0.s8 %v346
        %v348 = vperm.slane %v340, %v347
        %v349 = vrot.slane %v320, 4
        %v350 = vsel %vm277, %v349, %v308
        %v351 = vrot.slane %v308, 4
        %v352 = vsel %vm277, %v320, %v351
        %v354 = vunpack.c.l.s4 1934713408
        %v355 = vunpack.c.0.s8 %v354
        %v356 = vperm.slane %v350, %v355
        %v358 = vunpack.c.l.s4 1934713408
        %v359 = vunpack.c.0.s8 %v358
        %v360 = vperm.slane %v352, %v359
        %v361 = vrot.slane %v324, 4
        %v362 = vsel %vm277, %v361, %v312
        %v363 = vrot.slane %v312, 4
        %v364 = vsel %vm277, %v324, %v363
        %v366 = vunpack.c.l.s4 1934713408
        %v367 = vunpack.c.0.s8 %v366
        %v368 = vperm.slane %v362, %v367
        %v370 = vunpack.c.l.s4 1934713408
        %v371 = vunpack.c.0.s8 %v370
        %v372 = vperm.slane %v364, %v371
        %v373 = vrot.slane %v356, 4
        %v374 = vsel %vm277, %v373, %v332
        %v375 = vrot.slane %v332, 4
        %v376 = vsel %vm277, %v356, %v375
        %v377 = vrot.slane %v360, 4
        %v378 = vsel %vm277, %v377, %v336
        %v379 = vrot.slane %v336, 4
        %v380 = vsel %vm277, %v360, %v379
        %v381 = vrot.slane %v368, 4
        %v382 = vsel %vm277, %v381, %v344
        %v383 = vrot.slane %v344, 4
        %v384 = vsel %vm277, %v368, %v383
        %v385 = vrot.slane %v372, 4
        %v386 = vsel %vm277, %v385, %v348
        %v387 = vrot.slane %v348, 4
        %v388 = vsel %vm277, %v372, %v387
        %v389 = vrot.slane %v374, 4
        %v390 = vadd.f32 %v374, %v389
        %v391 = vrot.slane %v390, 2
        %v392 = vadd.f32 %v390, %v391
        %v393 = vrot.slane %v392, 1
        %v394 = vadd.f32 %v392, %v393
        %v395 = vrot.slane %v376, 4
        %v396 = vadd.f32 %v376, %v395
        %v397 = vrot.slane %v396, 2
        %v398 = vadd.f32 %v396, %v397
        %v399 = vrot.slane %v398, 1
        %v400 = vadd.f32 %v398, %v399
        %v401 = vrot.slane %v378, 4
        %v402 = vadd.f32 %v378, %v401
        %v403 = vrot.slane %v402, 2
        %v404 = vadd.f32 %v402, %v403
        %v405 = vrot.slane %v404, 1
        %v406 = vadd.f32 %v404, %v405
        %v407 = vrot.slane %v380, 4
        %v408 = vadd.f32 %v380, %v407
        %v409 = vrot.slane %v408, 2
        %v410 = vadd.f32 %v408, %v409
        %v411 = vrot.slane %v410, 1
        %v412 = vadd.f32 %v410, %v411
        %v413 = vrot.slane %v382, 4
        %v414 = vadd.f32 %v382, %v413
        %v415 = vrot.slane %v414, 2
        %v416 = vadd.f32 %v414, %v415
        %v417 = vrot.slane %v416, 1
        %v418 = vadd.f32 %v416, %v417
        %v419 = vrot.slane %v384, 4
        %v420 = vadd.f32 %v384, %v419
        %v421 = vrot.slane %v420, 2
        %v422 = vadd.f32 %v420, %v421
        %v423 = vrot.slane %v422, 1
        %v424 = vadd.f32 %v422, %v423
        %v425 = vrot.slane %v386, 4
        %v426 = vadd.f32 %v386, %v425
        %v427 = vrot.slane %v426, 2
        %v428 = vadd.f32 %v426, %v427
        %v429 = vrot.slane %v428, 1
        %v430 = vadd.f32 %v428, %v429
        %v431 = vrot.slane %v388, 4
        %v432 = vadd.f32 %v388, %v431
        %v433 = vrot.slane %v432, 2
        %v434 = vadd.f32 %v432, %v433
        %v435 = vrot.slane %v434, 1
        %v436 = vadd.f32 %v434, %v435
        %vm445 = vcmask 1041409
        %v446 = vsel %vm445, %v400, %v394
        %vm447 = vcmask 1042434
        %v448 = vsel %vm447, %v406, %v446
        %vm449 = vcmask 1043459
        %v450 = vsel %vm449, %v412, %v448
        %vm451 = vcmask 1044484
        %v452 = vsel %vm451, %v418, %v450
        %vm453 = vcmask 1045509
        %v454 = vsel %vm453, %v424, %v452
        %vm455 = vcmask 1046534
        %v456 = vsel %vm455, %v430, %v454
        %vm457 = vcmask 1047559
        %v458 = vsel %vm457, %v436, %v456
        %v460 = vadd.f32 %v275, %v458
        %461 = vst [vmem:[%s221] sm:$0xff] %v460
        %s462 = sand.u32 %s98, 1
        %s463 = scalar_lea.sflag [#allocation4], %s462
        %s464 = sand.u32 %s98, 1
        %s465 = smul.addr %s464, 8
        %s466 = scalar_lea.vmem [#allocation7], %s465
        // Predicated region
        $region41: #{tpu_custom_call.1} parent=27 // pred_check
          %p467 = pneg %p108
        $region42: #{tpu_custom_call.1} parent=27 // pred_check_branch
          %469 = sbr.rel (%p467) target = $region44
        $region43: #{tpu_custom_call.1} parent=27 // pred_region
          %471 = vsyncadd %s463, 0
          %s472 = smul.addr %s26, 8
          %s473 = scalar_lea.hbm %s2, %s472
          %s475 = sshll.u32 %s466, 4
          %s476 = int_to_ptr.vmem [resolvable:$true] %s475
          %s477 = sshll.u32 %s473, 4
          %s478 = int_to_ptr.hbm [resolvable:$true] %s477
          %480 = dma.vmem_to_hbm [thread:$0]  %s476, 128, %s478, %s463
        $region44: #{tpu_custom_call.1} parent=27 // pred_fallthru
          _
      $region28: #{tpu_custom_call.1} parent=5 // pred_fallthru
        _
      %p481 = scmp.le.s32.totalorder 2, %s17
      // Predicated region
      $region45: #{tpu_custom_call.1} parent=5 // pred_check
        %p482 = pneg %p481
      $region46: #{tpu_custom_call.1} parent=5 // pred_check_branch
        %484 = sbr.rel (%p482) target = $region48
      $region47: #{tpu_custom_call.1} parent=5 // pred_region
        %s485 = ssub.s32 %s17, 2
        // Predicated region
        $region49: #{tpu_custom_call.1} parent=47 // pred_check
          %p486 = pneg %p114
        $region50: #{tpu_custom_call.1} parent=47 // pred_check_branch
          %488 = sbr.rel (%p486) target = $region52
        $region51: #{tpu_custom_call.1} parent=47 // pred_region
          %s489 = sand.u32 %s99, 1
          %s490 = scalar_lea.sflag [#allocation4], %s489
          %s491 = sand.u32 %s99, 1
          %s492 = smul.addr %s491, 8
          %s493 = scalar_lea.vmem [#allocation7], %s492
          %495 = dma.done %s490, 128
        $region52: #{tpu_custom_call.1} parent=47 // pred_fallthru
          _
      $region48: #{tpu_custom_call.1} parent=5 // pred_fallthru
        _
    $region6: #{tpu_custom_call.1} parent=1 // loop_footer
      %s21 = sadd.s32 1, %s17
    $region7: #{tpu_custom_call.1} parent=1 // loop_footer_branch
      %16 = sbr.rel target = $region3
    $region8: #{tpu_custom_call.1} parent=1 // loop_exit
      _
    %496 = vsyncpa [#allocation3], 1
    %s497 = scalar_lea.sflag [#allocation3], 1
    %498 = vsyncpa %s497, 1
    %499 = vsyncpa [#allocation6], 1
    %s500 = scalar_lea.sflag [#allocation6], 1
    %501 = vsyncpa %s500, 1
    %502 = vsyncpa [#allocation4], 1
    %s503 = scalar_lea.sflag [#allocation4], 1
    %504 = vsyncpa %s503, 1

</llo_original>
